<compile_context>
chip_gen: v6e
topology: v6e:2x2x1
jax: 0.10.0
libtpu: 0.0.40
codegen_flags: <defaults>
</compile_context>

<pallas_src>
import jax
import jax.numpy as jnp
from jax.experimental import pallas as pl
from jax.experimental.pallas import tpu as pltpu

K_IN = 784                       # natural input width (no K padding)
H1 = 128
H2, H2_PAD = 64, 128
NUM_CLASSES, OUT_PAD = 10, 128   # lane-dense padded output tile
NEG_INF = -1e30
MAX_TILE_B = 1024                # rows per grid step (upper bound)


def _round_up(x, m):
    return ((x + m - 1) // m) * m


def _choose_tile_b(B):
    """Large tiles to amortize per-step overhead, but keep >=2 grid steps
    when the batch allows (v7x has 2 TensorCores)."""
    B8 = _round_up(max(B, 1), 8)
    if B8 <= 16:
        return B8
    return min(MAX_TILE_B, _round_up(B8 // 2, 8))


def mlp_kernel(x_ref, w1_ref, b1_ref, w2_ref, b2_ref, w3_ref, b3_ref, o_ref):
    # x_ref: (tile_b, 784) bf16; weights bf16; biases f32; o_ref: (tile_b, 128) bf16.
    x = x_ref[...]

    # fc1 + relu  (bf16 inputs, f32 MXU accumulation)
    h1 = jnp.dot(x, w1_ref[...], preferred_element_type=jnp.float32) + b1_ref[...]
    h1 = jnp.maximum(h1, 0.0).astype(jnp.bfloat16)

    # fc2 + relu
    h2 = jnp.dot(h1, w2_ref[...], preferred_element_type=jnp.float32) + b2_ref[...]
    h2 = jnp.maximum(h2, 0.0).astype(jnp.bfloat16)

    # fc3 (padded to 128 output lanes; only first 10 columns are real)
    logits = jnp.dot(h2, w3_ref[...], preferred_element_type=jnp.float32) + b3_ref[...]
    col = jax.lax.broadcasted_iota(jnp.int32, logits.shape, 1)
    logits = jnp.where(col < NUM_CLASSES, logits, NEG_INF)   # f32 mask, f32 softmax

    # numerically-stable softmax over the class axis (exact division)
    m = jnp.max(logits, axis=-1, keepdims=True)
    e = jnp.exp(logits - m)
    denom = jnp.sum(e, axis=-1, keepdims=True)
    o_ref[...] = (e / denom).astype(o_ref.dtype)


def _pad_params(w1, b1, w2, b2, w3, b3):
    """Zero-pad hidden/output columns to lane multiples; bf16 weights, f32 biases.
    Zero-padding is exact through the linears + ReLU."""
    w1p = w1.astype(jnp.bfloat16)                                               # (784,128)
    b1p = b1.astype(jnp.float32)                                                # (1,128)
    w2p = jnp.pad(w2, ((0, 0), (0, H2_PAD - H2))).astype(jnp.bfloat16)          # (128,128)
    b2p = jnp.pad(b2, ((0, 0), (0, H2_PAD - H2))).astype(jnp.float32)           # (1,128)
    w3p = jnp.pad(w3, ((0, H2_PAD - H2), (0, OUT_PAD - NUM_CLASSES))).astype(jnp.bfloat16)
    b3p = jnp.pad(b3, ((0, 0), (0, OUT_PAD - NUM_CLASSES))).astype(jnp.float32)
    return w1p, b1p, w2p, b2p, w3p, b3p


def mlp_forward(x, w1, b1, w2, b2, w3, b3, tile_b=None):
    B, K = x.shape
    assert K == K_IN
    if tile_b is None:
        tile_b = _choose_tile_b(B)
    B_pad = _round_up(B, tile_b)

    # Only a bf16 cast (+ batch pad when needed); allow_input_fusion lets XLA
    # fuse this producer into the pallas_call operand instead of materializing
    # a separate HBM copy.
    xp = x.astype(jnp.bfloat16)
    if B_pad != B:
        xp = jnp.pad(xp, ((0, B_pad - B), (0, 0)))
    w1p, b1p, w2p, b2p, w3p, b3p = _pad_params(w1, b1, w2, b2, w3, b3)

    def full(shape):  # weights/biases: whole array, VMEM-resident every step
        return pl.BlockSpec(shape, lambda i: (0, 0))

    weight_bytes = (K_IN * H1 + H1 * H2_PAD + H2_PAD * OUT_PAD) * 2 \
        + (H1 + H2_PAD + OUT_PAD) * 4

    out = pl.pallas_call(
        mlp_kernel,
        out_shape=jax.ShapeDtypeStruct((B_pad, OUT_PAD), jnp.bfloat16),
        grid=(B_pad // tile_b,),
        in_specs=[
            pl.BlockSpec((tile_b, K_IN), lambda i: (i, 0)),    # x tile (784 lanes, no pad)
            full((K_IN, H1)), full((1, H1)),
            full((H1, H2_PAD)), full((1, H2_PAD)),
            full((H2_PAD, OUT_PAD)), full((1, OUT_PAD)),
        ],
        out_specs=pl.BlockSpec((tile_b, OUT_PAD), lambda i: (i, 0)),
        compiler_params=pltpu.CompilerParams(
            dimension_semantics=("parallel",),
            allow_input_fusion=[True, False, False, False, False, False, False],
        ),
        cost_estimate=pl.CostEstimate(
            flops=2 * B_pad * (K_IN * H1 + H1 * H2_PAD + H2_PAD * OUT_PAD),
            transcendentals=B_pad * OUT_PAD,
            bytes_accessed=(B_pad * K_IN * 2          # x read (bf16)
                            + weight_bytes            # weights + biases
                            + B_pad * OUT_PAD * 2),   # bf16 output writeback
        ),
    )(xp, w1p, b1p, w2p, b2p, w3p, b3p)

    return out[:B, :NUM_CLASSES]   # bf16 probabilities


def init_params(key):
    # Deterministic init mimicking nn.Linear's uniform(-1/sqrt(fan_in), 1/sqrt(fan_in)).
    ks = jax.random.split(key, 6)

    def linear(kw, kb, fan_in, fan_out):
        bound = 1.0 / jnp.sqrt(fan_in)
        # stored as [in, out] (already transposed vs. PyTorch's [out, in])
        w = jax.random.uniform(kw, (fan_in, fan_out), jnp.float32, -bound, bound)
        b = jax.random.uniform(kb, (1, fan_out), jnp.float32, -bound, bound)
        return w, b

    w1, b1 = linear(ks[0], ks[1], K_IN, H1)
    w2, b2 = linear(ks[2], ks[3], H1, H2)
    w3, b3 = linear(ks[4], ks[5], H2, NUM_CLASSES)
    return w1, b1, w2, b2, w3, b3


def reference_forward(x, w1, b1, w2, b2, w3, b3):
    h1 = jnp.maximum(x @ w1 + b1, 0.0)
    h2 = jnp.maximum(h1 @ w2 + b2, 0.0)
    logits = h2 @ w3 + b3
    return jax.nn.softmax(logits, axis=1)


if __name__ == "__main__":
    key = jax.random.PRNGKey(0)
    kx, kp = jax.random.split(key)

    # Small deterministic test: 32 MNIST-sized rows (grid of 2 tiles of 16 rows).
    B = 32
    x = jax.random.normal(kx, (B, K_IN), dtype=jnp.float32)
    params = init_params(kp)

    out = mlp_forward(x, *params)
    out = jax.block_until_ready(out)

    ref = reference_forward(x, *params)  # f32 reference of the unpadded model
    out_f32 = out.astype(jnp.float32)
    assert out.shape == (B, NUM_CLASSES)
    assert out.dtype == jnp.bfloat16
    # bf16 matmul inputs + bf16 output quantization -> loosened tolerances.
    assert jnp.allclose(out_f32, ref, atol=3e-2, rtol=3e-2)
    assert jnp.allclose(jnp.sum(out_f32, axis=1), 1.0, atol=1e-2)

    print("KERNEL_OK")
</pallas_src>

<mosaic_0001>
module attributes {stable_mosaic.version = 11 : i64} {
  func.func @mlp_kernel(%arg0: i32, %arg1: memref<16x784xbf16, #tpu.memory_space<vmem>>, %arg2: memref<784x128xbf16, #tpu.memory_space<vmem>>, %arg3: memref<1x128xf32, #tpu.memory_space<vmem>>, %arg4: memref<128x128xbf16, #tpu.memory_space<vmem>>, %arg5: memref<1x128xf32, #tpu.memory_space<vmem>>, %arg6: memref<128x128xbf16, #tpu.memory_space<vmem>>, %arg7: memref<1x128xf32, #tpu.memory_space<vmem>>, %arg8: memref<16x128xbf16, #tpu.memory_space<vmem>>) attributes {dimension_semantics = [#tpu.dimension_semantics<parallel>], iteration_bounds = array<i64: 2>, scalar_prefetch = 0 : i64, scratch_operands = 0 : i64, tpu.core_type = #tpu.core_type<tc>, window_params = [{transform_indices = @transform_0, window_bounds = array<i64: 16, 784>}, {pipeline_mode = #tpu.pipeline_mode<synchronous>, transform_indices = @transform_1, window_bounds = array<i64: 784, 128>}, {pipeline_mode = #tpu.pipeline_mode<synchronous>, transform_indices = @transform_2, window_bounds = array<i64: 1, 128>}, {pipeline_mode = #tpu.pipeline_mode<synchronous>, transform_indices = @transform_3, window_bounds = array<i64: 128, 128>}, {pipeline_mode = #tpu.pipeline_mode<synchronous>, transform_indices = @transform_4, window_bounds = array<i64: 1, 128>}, {pipeline_mode = #tpu.pipeline_mode<synchronous>, transform_indices = @transform_5, window_bounds = array<i64: 128, 128>}, {pipeline_mode = #tpu.pipeline_mode<synchronous>, transform_indices = @transform_6, window_bounds = array<i64: 1, 128>}, {transform_indices = @transform_7, window_bounds = array<i64: 16, 128>}]} {
    %c0 = arith.constant 0 : index
    %c0_0 = arith.constant 0 : index
    %0 = vector.load %arg1[%c0, %c0_0] : memref<16x784xbf16, #tpu.memory_space<vmem>>, vector<16x784xbf16>
    %c0_1 = arith.constant 0 : index
    %c0_2 = arith.constant 0 : index
    %1 = vector.load %arg2[%c0_1, %c0_2] : memref<784x128xbf16, #tpu.memory_space<vmem>>, vector<784x128xbf16>
    %cst = arith.constant dense<0.000000e+00> : vector<16x128xf32>
    %2 = tpu.matmul %0, %1, %cst {dimension_numbers = #tpu.dot_dimension_numbers<[1], [0], [0], [1], [0, 0, 1, 1], [], []>} : vector<16x784xbf16>, vector<784x128xbf16>, vector<16x128xf32> -> vector<16x128xf32>
    %c0_3 = arith.constant 0 : index
    %c0_4 = arith.constant 0 : index
    %3 = vector.load %arg3[%c0_3, %c0_4] : memref<1x128xf32, #tpu.memory_space<vmem>>, vector<1x128xf32>
    %4 = vector.broadcast %3 : vector<1x128xf32> to vector<16x128xf32>
    %5 = arith.addf %2, %4 : vector<16x128xf32>
    %cst_5 = arith.constant 0.000000e+00 : f32
    %6 = vector.broadcast %cst_5 : f32 to vector<16x128xf32>
    %7 = arith.maximumf %5, %6 : vector<16x128xf32>
    %8 = arith.truncf %7 : vector<16x128xf32> to vector<16x128xbf16>
    %c0_6 = arith.constant 0 : index
    %c0_7 = arith.constant 0 : index
    %9 = vector.load %arg4[%c0_6, %c0_7] : memref<128x128xbf16, #tpu.memory_space<vmem>>, vector<128x128xbf16>
    %cst_8 = arith.constant dense<0.000000e+00> : vector<16x128xf32>
    %10 = tpu.matmul %8, %9, %cst_8 {dimension_numbers = #tpu.dot_dimension_numbers<[1], [0], [0], [1], [0, 0, 1, 1], [], []>} : vector<16x128xbf16>, vector<128x128xbf16>, vector<16x128xf32> -> vector<16x128xf32>
    %c0_9 = arith.constant 0 : index
    %c0_10 = arith.constant 0 : index
    %11 = vector.load %arg5[%c0_9, %c0_10] : memref<1x128xf32, #tpu.memory_space<vmem>>, vector<1x128xf32>
    %12 = vector.broadcast %11 : vector<1x128xf32> to vector<16x128xf32>
    %13 = arith.addf %10, %12 : vector<16x128xf32>
    %cst_11 = arith.constant 0.000000e+00 : f32
    %14 = vector.broadcast %cst_11 : f32 to vector<16x128xf32>
    %15 = arith.maximumf %13, %14 : vector<16x128xf32>
    %16 = arith.truncf %15 : vector<16x128xf32> to vector<16x128xbf16>
    %c0_12 = arith.constant 0 : index
    %c0_13 = arith.constant 0 : index
    %17 = vector.load %arg6[%c0_12, %c0_13] : memref<128x128xbf16, #tpu.memory_space<vmem>>, vector<128x128xbf16>
    %cst_14 = arith.constant dense<0.000000e+00> : vector<16x128xf32>
    %18 = tpu.matmul %16, %17, %cst_14 {dimension_numbers = #tpu.dot_dimension_numbers<[1], [0], [0], [1], [0, 0, 1, 1], [], []>} : vector<16x128xbf16>, vector<128x128xbf16>, vector<16x128xf32> -> vector<16x128xf32>
    %c0_15 = arith.constant 0 : index
    %c0_16 = arith.constant 0 : index
    %19 = vector.load %arg7[%c0_15, %c0_16] : memref<1x128xf32, #tpu.memory_space<vmem>>, vector<1x128xf32>
    %20 = vector.broadcast %19 : vector<1x128xf32> to vector<16x128xf32>
    %21 = arith.addf %18, %20 : vector<16x128xf32>
    %22 = tpu.iota {dimensions = array<i32: 1>} : vector<16x128xi32>
    %c10_i32 = arith.constant 10 : i32
    %23 = vector.broadcast %c10_i32 : i32 to vector<16x128xi32>
    %24 = arith.cmpi slt, %22, %23 : vector<16x128xi32>
    %cst_17 = arith.constant -1.000000e+30 : f32
    %25 = vector.broadcast %cst_17 : f32 to vector<16x128xf32>
    %26 = arith.select %24, %21, %25 : vector<16x128xi1>, vector<16x128xf32>
    %cst_18 = arith.constant dense<0xFF800000> : vector<16xf32>
    %27 = vector.multi_reduction <maximumf>, %26, %cst_18 [1] : vector<16x128xf32> to vector<16xf32>
    %28 = vector.shape_cast %27 : vector<16xf32> to vector<16x1xf32>
    %29 = vector.broadcast %28 : vector<16x1xf32> to vector<16x128xf32>
    %30 = arith.subf %26, %29 : vector<16x128xf32>
    %31 = math.exp %30 : vector<16x128xf32>
    %cst_19 = arith.constant dense<0.000000e+00> : vector<16xf32>
    %32 = vector.multi_reduction <add>, %31, %cst_19 [1] : vector<16x128xf32> to vector<16xf32>
    %33 = vector.shape_cast %32 : vector<16xf32> to vector<16x1xf32>
    %34 = vector.broadcast %33 : vector<16x1xf32> to vector<16x128xf32>
    %35 = arith.divf %31, %34 : vector<16x128xf32>
    %36 = arith.truncf %35 : vector<16x128xf32> to vector<16x128xbf16>
    %c0_20 = arith.constant 0 : index
    %c0_21 = arith.constant 0 : index
    %37 = vector.load %arg8[%c0_20, %c0_21] : memref<16x128xbf16, #tpu.memory_space<vmem>>, vector<16x128xbf16>
    tpu.vector_store %arg8[%c0_20, %c0_21], %36 {strides = array<i32>} : memref<16x128xbf16, #tpu.memory_space<vmem>>, vector<16x128xbf16>,
    return
  }
  func.func @transform_0(%arg0: i32) -> (i32, i32) {
    %c0_i32 = arith.constant 0 : i32
    %c0_i32_0 = arith.constant 0 : i32
    return %arg0, %c0_i32 : i32, i32
  }
  func.func @transform_1(%arg0: i32) -> (i32, i32) {
    %c0_i32 = arith.constant 0 : i32
    %c0_i32_0 = arith.constant 0 : i32
    %c0_i32_1 = arith.constant 0 : i32
    return %c0_i32, %c0_i32_0 : i32, i32
  }
  func.func @transform_2(%arg0: i32) -> (i32, i32) {
    %c0_i32 = arith.constant 0 : i32
    %c0_i32_0 = arith.constant 0 : i32
    %c0_i32_1 = arith.constant 0 : i32
    return %c0_i32, %c0_i32_0 : i32, i32
  }
  func.func @transform_3(%arg0: i32) -> (i32, i32) {
    %c0_i32 = arith.constant 0 : i32
    %c0_i32_0 = arith.constant 0 : i32
    %c0_i32_1 = arith.constant 0 : i32
    return %c0_i32, %c0_i32_0 : i32, i32
  }
  func.func @transform_4(%arg0: i32) -> (i32, i32) {
    %c0_i32 = arith.constant 0 : i32
    %c0_i32_0 = arith.constant 0 : i32
    %c0_i32_1 = arith.constant 0 : i32
    return %c0_i32, %c0_i32_0 : i32, i32
  }
  func.func @transform_5(%arg0: i32) -> (i32, i32) {
    %c0_i32 = arith.constant 0 : i32
    %c0_i32_0 = arith.constant 0 : i32
    %c0_i32_1 = arith.constant 0 : i32
    return %c0_i32, %c0_i32_0 : i32, i32
  }
  func.func @transform_6(%arg0: i32) -> (i32, i32) {
    %c0_i32 = arith.constant 0 : i32
    %c0_i32_0 = arith.constant 0 : i32
    %c0_i32_1 = arith.constant 0 : i32
    return %c0_i32, %c0_i32_0 : i32, i32
  }
  func.func @transform_7(%arg0: i32) -> (i32, i32) {
    %c0_i32 = arith.constant 0 : i32
    %c0_i32_0 = arith.constant 0 : i32
    return %arg0, %c0_i32 : i32, i32
  }
}

</mosaic_0001>

<llo_original>
// kernel: tpu_custom_call.1
$region0: #{tpu_custom_call.1}
  #allocation0 [shape = 'u32[]', space=smem, size = 0x4, offset = 0x4, fixed_abs, tag = 'smem constant byte address 0x4 - core index']
  #allocation1 [shape = 'u32[144,128]{1,0:T(1,128)}', space=vmem, size = 0x12000, scoped, tag = 'internal scratch']
  %s0 = inlined_call_operand.hbm [shape: bf16[32,784], index: 0, kind: input, shape index: {}]
  %s1 = inlined_call_operand.hbm [shape: bf16[784,128], index: 1, kind: input, shape index: {}]
  %s2 = inlined_call_operand.vmem [shape: f32[1,128], index: 2, kind: input, shape index: {}]
  %s3 = inlined_call_operand.hbm [shape: bf16[128,128], index: 3, kind: input, shape index: {}]
  %s4 = inlined_call_operand.vmem [shape: f32[1,128], index: 4, kind: input, shape index: {}]
  %s5 = inlined_call_operand.hbm [shape: bf16[128,128], index: 5, kind: input, shape index: {}]
  %s6 = inlined_call_operand.vmem [shape: f32[1,128], index: 6, kind: input, shape index: {}]
  %s7 = inlined_call_operand.hbm [shape: bf16[32,128], index: 7, kind: output, shape index: {}]
  %s8 = sld [smem:[#allocation0]]
  $region77: #{tpu_custom_call.1} parent=0
    _
  %s10 = ssub.s32 1, %s8
  %s11 = scalar_select 0, %s10, %s8
  $region1: #{tpu_custom_call.1} parent=0
    #allocation2 [shape = 'u8[57344]{0}', space=vmem, size = 0xe000, scoped, tag = 'input window, operand 0']
    #allocation3 [shape = 's32[2]{0}', space=sflag, size = 0x8, scoped, tag = 'scoped memory for tpu_custom_call.1']
    #allocation4 [shape = 's32[2]{0}', space=sflag, size = 0x8, scoped, tag = 'scoped memory for tpu_custom_call.1']
    #allocation5 [shape = 'u8[200704]{0}', space=vmem, size = 0x31000, scoped, tag = 'input window, operand 1, single buffered']
    #allocation6 [shape = 's32[1]{0}', space=sflag, size = 0x4, scoped, tag = 'scoped memory for tpu_custom_call.1']
    #allocation7 [shape = 'u8[32768]{0}', space=vmem, size = 0x8000, scoped, tag = 'input window, operand 3, single buffered']
    #allocation8 [shape = 'u8[32768]{0}', space=vmem, size = 0x8000, scoped, tag = 'input window, operand 5, single buffered']
    #allocation9 [shape = 's32[1]{0}', space=sflag, size = 0x4, scoped, tag = 'scoped memory for tpu_custom_call.1']
    #allocation10 [shape = 'u8[8192]{0}', space=vmem, size = 0x2000, scoped, tag = 'output window, operand 0']
    %12 = vsyncpa [#allocation3], 0
    %s13 = scalar_lea.sflag [#allocation3], 1
    %14 = vsyncpa %s13, 0
    %15 = vsyncpa [#allocation6], 0
    %16 = vsyncpa [#allocation9], 0
    %17 = vsyncpa [#allocation4], 0
    %s18 = scalar_lea.sflag [#allocation4], 1
    %19 = vsyncpa %s18, 0
    loop: start=0, step=1, limit=4
    $region2: #{tpu_custom_call.1} parent=1 // loop_pre_header
      _
    $region3: #{tpu_custom_call.1} parent=1 // loop_header
      %s21 = sphi 0, %s25
      %p22 = scmp.ge.s32.totalorder %s21, 4
      %s31 = sphi 0, %s33
      %s34 = sphi 0, %s31
      %s35 = sphi 0, %s34
      %s51 = sphi 0, %s35
      %s55 = sphi 0, %s55
      %s57 = sphi 0, %s55
      %s58 = sphi 0, %s57
      %s72 = sphi 0, %s58
      %s76 = sphi 0, %s76
      %s78 = sphi 0, %s76
      %s79 = sphi 0, %s78
      %s93 = sphi 0, %s79
      %s97 = sphi 0, %s97
      %s99 = sphi 0, %s97
      %s100 = sphi 0, %s99
      %s114 = sphi 0, %s100
      %s118 = sphi 0, %s118
      %s120 = sphi 0, %s118
      %s121 = sphi 0, %s120
      %s135 = sphi 0, %s121
      %s139 = sphi 0, %s139
      %s141 = sphi 0, %s139
      %s142 = sphi 0, %s141
      %s156 = sphi 0, %s142
      %s160 = sphi 0, %s160
      %s162 = sphi 0, %s160
      %s163 = sphi 0, %s162
      %s177 = sphi 0, %s163
      %s183 = sphi 0, %s185
      %s186 = sphi 0, %s183
      %s187 = sphi 0, %s186
      %s203 = sphi 0, %s187
    $region4: #{tpu_custom_call.1} parent=1 // loop_header_branch
      %24 = sbr.rel (%p22) target = $region8
    $region5: #{tpu_custom_call.1} parent=1 // loop_body
      %s26 = ssub.s32 %s21, 1
      %s27 = ssub.s32 %s21, 2
      %s28 = sadd.s32 %s21, 1
      %s29 = ssub.s32 %s21, %s28
      %p30 = scmp.eq.s32.totalorder %s29, 0
      %s32 = sadd.s32 %s31, 1
      %s33 = scalar_select %p30, %s31, %s32
      %p36 = pneg %p30
      %p37 = scmp.eq.s32.totalorder %s21, 1
      %p38 = por %p36, %p37
      %p39 = scmp.ne.s32.totalorder %s31, %s34
      %p40 = scmp.eq.s32.totalorder %s21, 0
      %p41 = por %p39, %p40
      %p42 = scmp.ne.s32.totalorder %s31, %s34
      %p43 = scmp.eq.s32.totalorder %s26, 1
      %p44 = por %p42, %p43
      %p45 = scmp.ne.s32.totalorder %s34, %s35
      %p46 = scmp.eq.s32.totalorder %s26, 0
      %p47 = por %p45, %p46
      %p48 = scmp.ne.s32.totalorder %s34, %s35
      %p49 = scmp.eq.s32.totalorder %s27, 1
      %p50 = por %p48, %p49
      %p52 = scmp.ne.s32.totalorder %s35, %s51
      %p53 = scmp.eq.s32.totalorder %s27, 0
      %p54 = por %p52, %p53
      %s56 = sadd.s32 %s55, 1
      %p59 = scmp.eq.s32.totalorder %s21, 1
      %p60 = scmp.ne.s32.totalorder %s55, %s57
      %p61 = scmp.eq.s32.totalorder %s21, 0
      %p62 = por %p60, %p61
      %p63 = scmp.ne.s32.totalorder %s55, %s57
      %p64 = scmp.eq.s32.totalorder %s26, 1
      %p65 = por %p63, %p64
      %p66 = scmp.ne.s32.totalorder %s57, %s58
      %p67 = scmp.eq.s32.totalorder %s26, 0
      %p68 = por %p66, %p67
      %p69 = scmp.ne.s32.totalorder %s57, %s58
      %p70 = scmp.eq.s32.totalorder %s27, 1
      %p71 = por %p69, %p70
      %p73 = scmp.ne.s32.totalorder %s58, %s72
      %p74 = scmp.eq.s32.totalorder %s27, 0
      %p75 = por %p73, %p74
      %s77 = sadd.s32 %s76, 1
      %p80 = scmp.eq.s32.totalorder %s21, 1
      %p81 = scmp.ne.s32.totalorder %s76, %s78
      %p82 = scmp.eq.s32.totalorder %s21, 0
      %p83 = por %p81, %p82
      %p84 = scmp.ne.s32.totalorder %s76, %s78
      %p85 = scmp.eq.s32.totalorder %s26, 1
      %p86 = por %p84, %p85
      %p87 = scmp.ne.s32.totalorder %s78, %s79
      %p88 = scmp.eq.s32.totalorder %s26, 0
      %p89 = por %p87, %p88
      %p90 = scmp.ne.s32.totalorder %s78, %s79
      %p91 = scmp.eq.s32.totalorder %s27, 1
      %p92 = por %p90, %p91
      %p94 = scmp.ne.s32.totalorder %s79, %s93
      %p95 = scmp.eq.s32.totalorder %s27, 0
      %p96 = por %p94, %p95
      %s98 = sadd.s32 %s97, 1
      %p101 = scmp.eq.s32.totalorder %s21, 1
      %p102 = scmp.ne.s32.totalorder %s97, %s99
      %p103 = scmp.eq.s32.totalorder %s21, 0
      %p104 = por %p102, %p103
      %p105 = scmp.ne.s32.totalorder %s97, %s99
      %p106 = scmp.eq.s32.totalorder %s26, 1
      %p107 = por %p105, %p106
      %p108 = scmp.ne.s32.totalorder %s99, %s100
      %p109 = scmp.eq.s32.totalorder %s26, 0
      %p110 = por %p108, %p109
      %p111 = scmp.ne.s32.totalorder %s99, %s100
      %p112 = scmp.eq.s32.totalorder %s27, 1
      %p113 = por %p111, %p112
      %p115 = scmp.ne.s32.totalorder %s100, %s114
      %p116 = scmp.eq.s32.totalorder %s27, 0
      %p117 = por %p115, %p116
      %s119 = sadd.s32 %s118, 1
      %p122 = scmp.eq.s32.totalorder %s21, 1
      %p123 = scmp.ne.s32.totalorder %s118, %s120
      %p124 = scmp.eq.s32.totalorder %s21, 0
      %p125 = por %p123, %p124
      %p126 = scmp.ne.s32.totalorder %s118, %s120
      %p127 = scmp.eq.s32.totalorder %s26, 1
      %p128 = por %p126, %p127
      %p129 = scmp.ne.s32.totalorder %s120, %s121
      %p130 = scmp.eq.s32.totalorder %s26, 0
      %p131 = por %p129, %p130
      %p132 = scmp.ne.s32.totalorder %s120, %s121
      %p133 = scmp.eq.s32.totalorder %s27, 1
      %p134 = por %p132, %p133
      %p136 = scmp.ne.s32.totalorder %s121, %s135
      %p137 = scmp.eq.s32.totalorder %s27, 0
      %p138 = por %p136, %p137
      %s140 = sadd.s32 %s139, 1
      %p143 = scmp.eq.s32.totalorder %s21, 1
      %p144 = scmp.ne.s32.totalorder %s139, %s141
      %p145 = scmp.eq.s32.totalorder %s21, 0
      %p146 = por %p144, %p145
      %p147 = scmp.ne.s32.totalorder %s139, %s141
      %p148 = scmp.eq.s32.totalorder %s26, 1
      %p149 = por %p147, %p148
      %p150 = scmp.ne.s32.totalorder %s141, %s142
      %p151 = scmp.eq.s32.totalorder %s26, 0
      %p152 = por %p150, %p151
      %p153 = scmp.ne.s32.totalorder %s141, %s142
      %p154 = scmp.eq.s32.totalorder %s27, 1
      %p155 = por %p153, %p154
      %p157 = scmp.ne.s32.totalorder %s142, %s156
      %p158 = scmp.eq.s32.totalorder %s27, 0
      %p159 = por %p157, %p158
      %s161 = sadd.s32 %s160, 1
      %p164 = scmp.eq.s32.totalorder %s21, 1
      %p165 = scmp.ne.s32.totalorder %s160, %s162
      %p166 = scmp.eq.s32.totalorder %s21, 0
      %p167 = por %p165, %p166
      %p168 = scmp.ne.s32.totalorder %s160, %s162
      %p169 = scmp.eq.s32.totalorder %s26, 1
      %p170 = por %p168, %p169
      %p171 = scmp.ne.s32.totalorder %s162, %s163
      %p172 = scmp.eq.s32.totalorder %s26, 0
      %p173 = por %p171, %p172
      %p174 = scmp.ne.s32.totalorder %s162, %s163
      %p175 = scmp.eq.s32.totalorder %s27, 1
      %p176 = por %p174, %p175
      %p178 = scmp.ne.s32.totalorder %s163, %s177
      %p179 = scmp.eq.s32.totalorder %s27, 0
      %p180 = por %p178, %p179
      %s181 = ssub.s32 %s21, %s28
      %p182 = scmp.eq.s32.totalorder %s181, 0
      %s184 = sadd.s32 %s183, 1
      %s185 = scalar_select %p182, %s183, %s184
      %p188 = pneg %p182
      %p189 = scmp.eq.s32.totalorder %s21, 1
      %p190 = por %p188, %p189
      %p191 = scmp.ne.s32.totalorder %s183, %s186
      %p192 = scmp.eq.s32.totalorder %s21, 0
      %p193 = por %p191, %p192
      %p194 = scmp.ne.s32.totalorder %s183, %s186
      %p195 = scmp.eq.s32.totalorder %s26, 1
      %p196 = por %p194, %p195
      %p197 = scmp.ne.s32.totalorder %s186, %s187
      %p198 = scmp.eq.s32.totalorder %s26, 0
      %p199 = por %p197, %p198
      %p200 = scmp.ne.s32.totalorder %s186, %s187
      %p201 = scmp.eq.s32.totalorder %s27, 1
      %p202 = por %p200, %p201
      %p204 = scmp.ne.s32.totalorder %s187, %s203
      %p205 = scmp.eq.s32.totalorder %s27, 0
      %p206 = por %p204, %p205
      %p207 = scmp.le.s32.totalorder 1, %s21
      %p208 = scmp.lt.s32.totalorder %s21, 3
      %p209 = pnand %p207, %p208
      %p210 = pneg %p209
      // Predicated region
      $region9: #{tpu_custom_call.1} parent=5 // pred_check
        _
      $region10: #{tpu_custom_call.1} parent=5 // pred_check_branch
        %212 = sbr.rel (%p209) target = $region12
      $region11: #{tpu_custom_call.1} parent=5 // pred_region
        %s213 = ssub.s32 %s21, 1
        // Predicated region
        $region13: #{tpu_custom_call.1} parent=11 // pred_check
          %p214 = pneg %p68
        $region14: #{tpu_custom_call.1} parent=11 // pred_check_branch
          %216 = sbr.rel (%p214) target = $region16
        $region15: #{tpu_custom_call.1} parent=11 // pred_region
          %s218 = ssub.s32 6272, 6272
          %219 = vsyncadd [#allocation6], %s218
          %s220 = sshll.u32 [#allocation5], 4
          %s221 = int_to_ptr.vmem [resolvable:$true] %s220
          %226 = dma.hbm_to_vmem [thread:$0]  %s1, 6272, %s221, [#allocation6], 64, 64, 4
        $region16: #{tpu_custom_call.1} parent=11 // pred_fallthru
          _
        // Predicated region
        $region17: #{tpu_custom_call.1} parent=11 // pred_check
          %p227 = pneg %p89
        $region18: #{tpu_custom_call.1} parent=11 // pred_check_branch
          %229 = sbr.rel (%p227) target = $region20
        $region19: #{tpu_custom_call.1} parent=11 // pred_region
          _
        $region20: #{tpu_custom_call.1} parent=11 // pred_fallthru
          _
        // Predicated region
        $region21: #{tpu_custom_call.1} parent=11 // pred_check
          %p230 = pneg %p110
        $region22: #{tpu_custom_call.1} parent=11 // pred_check_branch
          %232 = sbr.rel (%p230) target = $region24
        $region23: #{tpu_custom_call.1} parent=11 // pred_region
          %s234 = ssub.s32 1024, 1024
          %235 = vsyncadd [#allocation6], %s234
          %s236 = sshll.u32 [#allocation7], 4
          %s237 = int_to_ptr.vmem [resolvable:$true] %s236
          %242 = dma.hbm_to_vmem [thread:$0]  %s3, 1024, %s237, [#allocation6], 64, 64, 4
        $region24: #{tpu_custom_call.1} parent=11 // pred_fallthru
          _
        // Predicated region
        $region25: #{tpu_custom_call.1} parent=11 // pred_check
          %p243 = pneg %p131
        $region26: #{tpu_custom_call.1} parent=11 // pred_check_branch
          %245 = sbr.rel (%p243) target = $region28
        $region27: #{tpu_custom_call.1} parent=11 // pred_region
          _
        $region28: #{tpu_custom_call.1} parent=11 // pred_fallthru
          _
        // Predicated region
        $region29: #{tpu_custom_call.1} parent=11 // pred_check
          %p246 = pneg %p152
        $region30: #{tpu_custom_call.1} parent=11 // pred_check_branch
          %248 = sbr.rel (%p246) target = $region32
        $region31: #{tpu_custom_call.1} parent=11 // pred_region
          %s250 = ssub.s32 1024, 1024
          %251 = vsyncadd [#allocation9], %s250
          %s252 = sshll.u32 [#allocation8], 4
          %s253 = int_to_ptr.vmem [resolvable:$true] %s252
          %258 = dma.hbm_to_vmem [thread:$0]  %s5, 1024, %s253, [#allocation9], 64, 64, 4
        $region32: #{tpu_custom_call.1} parent=11 // pred_fallthru
          _
        // Predicated region
        $region33: #{tpu_custom_call.1} parent=11 // pred_check
          %p259 = pneg %p173
        $region34: #{tpu_custom_call.1} parent=11 // pred_check_branch
          %261 = sbr.rel (%p259) target = $region36
        $region35: #{tpu_custom_call.1} parent=11 // pred_region
          _
        $region36: #{tpu_custom_call.1} parent=11 // pred_fallthru
          _
      $region12: #{tpu_custom_call.1} parent=5 // pred_fallthru
        _
      %p262 = scmp.lt.s32.totalorder %s21, 2
      // Predicated region
      $region37: #{tpu_custom_call.1} parent=5 // pred_check
        %p263 = pneg %p262
      $region38: #{tpu_custom_call.1} parent=5 // pred_check_branch
        %265 = sbr.rel (%p263) target = $region40
      $region39: #{tpu_custom_call.1} parent=5 // pred_region
        // Predicated region
        $region41: #{tpu_custom_call.1} parent=39 // pred_check
          %p266 = pneg %p41
        $region42: #{tpu_custom_call.1} parent=39 // pred_check_branch
          %268 = sbr.rel (%p266) target = $region44
        $region43: #{tpu_custom_call.1} parent=39 // pred_region
          %s269 = sand.u32 %s31, 1
          %s270 = scalar_lea.sflag [#allocation3], %s269
          %s271 = sand.u32 %s31, 1
          %s272 = smul.addr %s271, 56
          %s273 = scalar_lea.vmem [#allocation2], %s272
          %s274 = smul.u32 2, %s21
          %s276 = ssub.s32 896, 896
          %277 = vsyncadd %s270, %s276
          %s278 = smul.addr %s274, 7
          %s279 = smul.addr %s278, 64
          %s280 = scalar_lea.hbm %s0, %s279
          %s281 = sshll.u32 %s273, 4
          %s282 = int_to_ptr.vmem [resolvable:$true] %s281
          %287 = dma.hbm_to_vmem [thread:$0]  %s280, 896, %s282, %s270, 448, 448, 28
        $region44: #{tpu_custom_call.1} parent=39 // pred_fallthru
          _
      $region40: #{tpu_custom_call.1} parent=5 // pred_fallthru
        _
      %p288 = scmp.le.s32.totalorder 1, %s21
      %p289 = scmp.lt.s32.totalorder %s21, 3
      %p290 = pnand %p288, %p289
      %p291 = pneg %p290
      // Predicated region
      $region45: #{tpu_custom_call.1} parent=5 // pred_check
        _
      $region46: #{tpu_custom_call.1} parent=5 // pred_check_branch
        %293 = sbr.rel (%p290) target = $region48
      $region47: #{tpu_custom_call.1} parent=5 // pred_region
        %s294 = ssub.s32 %s21, 1
        %s295 = sand.u32 %s34, 1
        %s296 = scalar_lea.sflag [#allocation3], %s295
        %s297 = sand.u32 %s34, 1
        %s298 = smul.addr %s297, 56
        %s299 = scalar_lea.vmem [#allocation2], %s298
        // Predicated region
        $region49: #{tpu_custom_call.1} parent=47 // pred_check
          %p300 = pneg %p47
        $region50: #{tpu_custom_call.1} parent=47 // pred_check_branch
          %302 = sbr.rel (%p300) target = $region52
        $region51: #{tpu_custom_call.1} parent=47 // pred_region
          %303 = dma.done %s296, 896
        $region52: #{tpu_custom_call.1} parent=47 // pred_fallthru
          _
        // Predicated region
        $region53: #{tpu_custom_call.1} parent=47 // pred_check
          %p304 = pneg %p68
        $region54: #{tpu_custom_call.1} parent=47 // pred_check_branch
          %306 = sbr.rel (%p304) target = $region56
        $region55: #{tpu_custom_call.1} parent=47 // pred_region
          %307 = dma.done [#allocation6], 6272
        $region56: #{tpu_custom_call.1} parent=47 // pred_fallthru
          _
        // Predicated region
        $region57: #{tpu_custom_call.1} parent=47 // pred_check
          %p308 = pneg %p110
        $region58: #{tpu_custom_call.1} parent=47 // pred_check_branch
          %310 = sbr.rel (%p308) target = $region60
        $region59: #{tpu_custom_call.1} parent=47 // pred_region
          %311 = dma.done [#allocation6], 1024
        $region60: #{tpu_custom_call.1} parent=47 // pred_fallthru
          _
        // Predicated region
        $region61: #{tpu_custom_call.1} parent=47 // pred_check
          %p312 = pneg %p152
        $region62: #{tpu_custom_call.1} parent=47 // pred_check_branch
          %314 = sbr.rel (%p312) target = $region64
        $region63: #{tpu_custom_call.1} parent=47 // pred_region
          %315 = dma.done [#allocation9], 1024
        $region64: #{tpu_custom_call.1} parent=47 // pred_fallthru
          _
        %s316 = sand.u32 %s34, 1
        %s317 = scalar_lea.sflag [#allocation3], %s316
        %s318 = sand.u32 %s34, 1
        %s319 = smul.addr %s318, 56
        %s320 = scalar_lea.vmem [#allocation2], %s319
        %p321 = pneg %p47
        %p322 = pneg %p44
        %p323 = pneg %p68
        %p324 = pneg %p65
        %p325 = pneg %p89
        %p326 = pneg %p86
        %p327 = pneg %p110
        %p328 = pneg %p107
        %p329 = pneg %p131
        %p330 = pneg %p128
        %p331 = pneg %p152
        %p332 = pneg %p149
        %p333 = pneg %p173
        %p334 = pneg %p170
        %p335 = pneg %p199
        %p336 = pneg %p196
        %s337 = sand.u32 %s186, 1
        %s338 = scalar_lea.sflag [#allocation4], %s337
        %s339 = sand.u32 %s186, 1
        %s340 = smul.addr %s339, 8
        %s341 = scalar_lea.vmem [#allocation10], %s340
        %s342 = smul.u32 2, %s26
        %s343 = smul.u32 2, %s26
        %v345 = vld [vmem:[%s299] sm:$0xff]
        %v346 = vld [vmem:[%s299 + $0x8] sm:$0xff]
        %v347 = vld [vmem:[%s299 + $0x10] sm:$0xff]
        %v348 = vld [vmem:[%s299 + $0x18] sm:$0xf]
        %v349 = vld [vmem:[%s299 + $0x1c] sm:$0xff]
        %v350 = vld [vmem:[%s299 + $0x24] sm:$0xff]
        %v351 = vld [vmem:[%s299 + $0x2c] sm:$0xff]
        %v352 = vld [vmem:[%s299 + $0x34] sm:$0xf]
        %v353 = vld [vmem:[#allocation5] sm:$0xf]
        %v354 = vld [vmem:[#allocation5 + $0x4] sm:$0xf]
        %v355 = vld [vmem:[#allocation5 + $0x8] sm:$0xf]
        %v356 = vld [vmem:[#allocation5 + $0xc] sm:$0xf]
        %v357 = vld [vmem:[#allocation5 + $0x10] sm:$0xf]
        %v358 = vld [vmem:[#allocation5 + $0x14] sm:$0xf]
        %v359 = vld [vmem:[#allocation5 + $0x18] sm:$0xf]
        %v360 = vld [vmem:[#allocation5 + $0x1c] sm:$0xf]
        %v361 = vld [vmem:[#allocation5 + $0x20] sm:$0xf]
        %v362 = vld [vmem:[#allocation5 + $0x24] sm:$0xf]
        %v363 = vld [vmem:[#allocation5 + $0x28] sm:$0xf]
        %v364 = vld [vmem:[#allocation5 + $0x2c] sm:$0xf]
        %v365 = vld [vmem:[#allocation5 + $0x30] sm:$0xf]
        %v366 = vld [vmem:[#allocation5 + $0x34] sm:$0xf]
        %v367 = vld [vmem:[#allocation5 + $0x38] sm:$0xf]
        %v368 = vld [vmem:[#allocation5 + $0x3c] sm:$0xf]
        %v369 = vld [vmem:[#allocation5 + $0x40] sm:$0xf]
        %v370 = vld [vmem:[#allocation5 + $0x44] sm:$0xf]
        %v371 = vld [vmem:[#allocation5 + $0x48] sm:$0xf]
        %v372 = vld [vmem:[#allocation5 + $0x4c] sm:$0xf]
        %v373 = vld [vmem:[#allocation5 + $0x50] sm:$0xf]
        %v374 = vld [vmem:[#allocation5 + $0x54] sm:$0xf]
        %v375 = vld [vmem:[#allocation5 + $0x58] sm:$0xf]
        %v376 = vld [vmem:[#allocation5 + $0x5c] sm:$0xf]
        %v377 = vld [vmem:[#allocation5 + $0x60] sm:$0xf]
        %v378 = vld [vmem:[#allocation5 + $0x64] sm:$0xf]
        %v379 = vld [vmem:[#allocation5 + $0x68] sm:$0xf]
        %v380 = vld [vmem:[#allocation5 + $0x6c] sm:$0xf]
        %v381 = vld [vmem:[#allocation5 + $0x70] sm:$0xf]
        %v382 = vld [vmem:[#allocation5 + $0x74] sm:$0xf]
        %v383 = vld [vmem:[#allocation5 + $0x78] sm:$0xf]
        %v384 = vld [vmem:[#allocation5 + $0x7c] sm:$0xf]
        %v385 = vld [vmem:[#allocation5 + $0x80] sm:$0xf]
        %v386 = vld [vmem:[#allocation5 + $0x84] sm:$0xf]
        %v387 = vld [vmem:[#allocation5 + $0x88] sm:$0xf]
        %v388 = vld [vmem:[#allocation5 + $0x8c] sm:$0xf]
        %v389 = vld [vmem:[#allocation5 + $0x90] sm:$0xf]
        %v390 = vld [vmem:[#allocation5 + $0x94] sm:$0xf]
        %v391 = vld [vmem:[#allocation5 + $0x98] sm:$0xf]
        %v392 = vld [vmem:[#allocation5 + $0x9c] sm:$0xf]
        %v393 = vld [vmem:[#allocation5 + $0xa0] sm:$0xf]
        %v394 = vld [vmem:[#allocation5 + $0xa4] sm:$0xf]
        %v395 = vld [vmem:[#allocation5 + $0xa8] sm:$0xf]
        %v396 = vld [vmem:[#allocation5 + $0xac] sm:$0xf]
        %v397 = vld [vmem:[#allocation5 + $0xb0] sm:$0xf]
        %v398 = vld [vmem:[#allocation5 + $0xb4] sm:$0xf]
        %v399 = vld [vmem:[#allocation5 + $0xb8] sm:$0xf]
        %v400 = vld [vmem:[#allocation5 + $0xbc] sm:$0xf]
        %v401 = vld [vmem:[#allocation5 + $0xc0] sm:$0xf]
        %v402 = vld [vmem:[#allocation5 + $0xc4] sm:$0xf]
        %v403 = vld [vmem:[#allocation5 + $0xc8] sm:$0xf]
        %v404 = vld [vmem:[#allocation5 + $0xcc] sm:$0xf]
        %v405 = vld [vmem:[#allocation5 + $0xd0] sm:$0xf]
        %v406 = vld [vmem:[#allocation5 + $0xd4] sm:$0xf]
        %v407 = vld [vmem:[#allocation5 + $0xd8] sm:$0xf]
        %v408 = vld [vmem:[#allocation5 + $0xdc] sm:$0xf]
        %v409 = vld [vmem:[#allocation5 + $0xe0] sm:$0xf]
        %v410 = vld [vmem:[#allocation5 + $0xe4] sm:$0xf]
        %v411 = vld [vmem:[#allocation5 + $0xe8] sm:$0xf]
        %v412 = vld [vmem:[#allocation5 + $0xec] sm:$0xf]
        %v413 = vld [vmem:[#allocation5 + $0xf0] sm:$0xf]
        %v414 = vld [vmem:[#allocation5 + $0xf4] sm:$0xf]
        %v415 = vld [vmem:[#allocation5 + $0xf8] sm:$0xf]
        %v416 = vld [vmem:[#allocation5 + $0xfc] sm:$0xf]
        %v417 = vld [vmem:[#allocation5 + $0x100] sm:$0xf]
        %v418 = vld [vmem:[#allocation5 + $0x104] sm:$0xf]
        %v419 = vld [vmem:[#allocation5 + $0x108] sm:$0xf]
        %v420 = vld [vmem:[#allocation5 + $0x10c] sm:$0xf]
        %v421 = vld [vmem:[#allocation5 + $0x110] sm:$0xf]
        %v422 = vld [vmem:[#allocation5 + $0x114] sm:$0xf]
        %v423 = vld [vmem:[#allocation5 + $0x118] sm:$0xf]
        %v424 = vld [vmem:[#allocation5 + $0x11c] sm:$0xf]
        %v425 = vld [vmem:[#allocation5 + $0x120] sm:$0xf]
        %v426 = vld [vmem:[#allocation5 + $0x124] sm:$0xf]
        %v427 = vld [vmem:[#allocation5 + $0x128] sm:$0xf]
        %v428 = vld [vmem:[#allocation5 + $0x12c] sm:$0xf]
        %v429 = vld [vmem:[#allocation5 + $0x130] sm:$0xf]
        %v430 = vld [vmem:[#allocation5 + $0x134] sm:$0xf]
        %v431 = vld [vmem:[#allocation5 + $0x138] sm:$0xf]
        %v432 = vld [vmem:[#allocation5 + $0x13c] sm:$0xf]
        %v433 = vld [vmem:[#allocation5 + $0x140] sm:$0xf]
        %v434 = vld [vmem:[#allocation5 + $0x144] sm:$0xf]
        %v435 = vld [vmem:[#allocation5 + $0x148] sm:$0xf]
        %v436 = vld [vmem:[#allocation5 + $0x14c] sm:$0xf]
        %v437 = vld [vmem:[#allocation5 + $0x150] sm:$0xf]
        %v438 = vld [vmem:[#allocation5 + $0x154] sm:$0xf]
        %v439 = vld [vmem:[#allocation5 + $0x158] sm:$0xf]
        %v440 = vld [vmem:[#allocation5 + $0x15c] sm:$0xf]
        %v441 = vld [vmem:[#allocation5 + $0x160] sm:$0xf]
        %v442 = vld [vmem:[#allocation5 + $0x164] sm:$0xf]
        %v443 = vld [vmem:[#allocation5 + $0x168] sm:$0xf]
        %v444 = vld [vmem:[#allocation5 + $0x16c] sm:$0xf]
        %v445 = vld [vmem:[#allocation5 + $0x170] sm:$0xf]
        %v446 = vld [vmem:[#allocation5 + $0x174] sm:$0xf]
        %v447 = vld [vmem:[#allocation5 + $0x178] sm:$0xf]
        %v448 = vld [vmem:[#allocation5 + $0x17c] sm:$0xf]
        %v449 = vld [vmem:[#allocation5 + $0x180] sm:$0xf]
        %v450 = vld [vmem:[#allocation5 + $0x184] sm:$0xf]
        %v451 = vld [vmem:[%s2] sm:$0x1]
        %v453 = vlaneseq
        %v454 = vshrl.u32 %v453, 7
        %v455 = vsub.s32 0, %v454
        %v456 = vrot.slane %v451, %v455
        %v466 = vunpack.c.l.b16 %v345
        %v467 = vunpack.c.h.b16 %v345
        %v468 = vunpack.c.l.b16 %v346
        %v469 = vunpack.c.h.b16 %v346
        %v470 = vunpack.c.l.b16 %v347
        %v471 = vunpack.c.h.b16 %v347
        %v472 = vunpack.c.l.b16 %v348
        %v473 = vunpack.c.l.b16 %v349
        %v474 = vunpack.c.h.b16 %v349
        %v475 = vunpack.c.l.b16 %v350
        %v476 = vunpack.c.h.b16 %v350
        %v477 = vunpack.c.l.b16 %v351
        %v478 = vunpack.c.h.b16 %v351
        %v479 = vunpack.c.l.b16 %v352
        %v480 = vpack.c.b16 %v473, %v466
        %v481 = vpack.c.b16 %v474, %v467
        %v482 = vpack.c.b16 %v475, %v468
        %v483 = vpack.c.b16 %v476, %v469
        %v484 = vpack.c.b16 %v477, %v470
        %v485 = vpack.c.b16 %v478, %v471
        %v486 = vpack.c.b16 %v479, %v472
        %v591 = vunpack.c.l.b16 %v353
        %v592 = vunpack.c.l.b16 %v354
        %v593 = vunpack.c.l.b16 %v355
        %v594 = vunpack.c.l.b16 %v356
        %v595 = vunpack.c.l.b16 %v357
        %v596 = vunpack.c.l.b16 %v358
        %v597 = vunpack.c.l.b16 %v359
        %v598 = vunpack.c.l.b16 %v360
        %v599 = vunpack.c.l.b16 %v361
        %v600 = vunpack.c.l.b16 %v362
        %v601 = vunpack.c.l.b16 %v363
        %v602 = vunpack.c.l.b16 %v364
        %v603 = vunpack.c.l.b16 %v365
        %v604 = vunpack.c.l.b16 %v366
        %v605 = vunpack.c.l.b16 %v367
        %v606 = vunpack.c.l.b16 %v368
        %v607 = vunpack.c.l.b16 %v369
        %v608 = vunpack.c.l.b16 %v370
        %v609 = vunpack.c.l.b16 %v371
        %v610 = vunpack.c.l.b16 %v372
        %v611 = vunpack.c.l.b16 %v373
        %v612 = vunpack.c.l.b16 %v374
        %v613 = vunpack.c.l.b16 %v375
        %v614 = vunpack.c.l.b16 %v376
        %v615 = vunpack.c.l.b16 %v377
        %v616 = vunpack.c.l.b16 %v378
        %v617 = vunpack.c.l.b16 %v379
        %v618 = vunpack.c.l.b16 %v380
        %v619 = vunpack.c.l.b16 %v381
        %v620 = vunpack.c.l.b16 %v382
        %v621 = vunpack.c.l.b16 %v383
        %v622 = vunpack.c.l.b16 %v384
        %v623 = vunpack.c.l.b16 %v385
        %v624 = vunpack.c.l.b16 %v386
        %v625 = vunpack.c.l.b16 %v387
        %v626 = vunpack.c.l.b16 %v388
        %v627 = vunpack.c.l.b16 %v389
        %v628 = vunpack.c.l.b16 %v390
        %v629 = vunpack.c.l.b16 %v391
        %v630 = vunpack.c.l.b16 %v392
        %v631 = vunpack.c.l.b16 %v393
        %v632 = vunpack.c.l.b16 %v394
        %v633 = vunpack.c.l.b16 %v395
        %v634 = vunpack.c.l.b16 %v396
        %v635 = vunpack.c.l.b16 %v397
        %v636 = vunpack.c.l.b16 %v398
        %v637 = vunpack.c.l.b16 %v399
        %v638 = vunpack.c.l.b16 %v400
        %v639 = vunpack.c.l.b16 %v401
        %v640 = vunpack.c.l.b16 %v402
        %v641 = vunpack.c.l.b16 %v403
        %v642 = vunpack.c.l.b16 %v404
        %v643 = vunpack.c.l.b16 %v405
        %v644 = vunpack.c.l.b16 %v406
        %v645 = vunpack.c.l.b16 %v407
        %v646 = vunpack.c.l.b16 %v408
        %v647 = vunpack.c.l.b16 %v409
        %v648 = vunpack.c.l.b16 %v410
        %v649 = vunpack.c.l.b16 %v411
        %v650 = vunpack.c.l.b16 %v412
        %v651 = vunpack.c.l.b16 %v413
        %v652 = vunpack.c.l.b16 %v414
        %v653 = vunpack.c.l.b16 %v415
        %v654 = vunpack.c.l.b16 %v416
        %v655 = vunpack.c.l.b16 %v417
        %v656 = vunpack.c.l.b16 %v418
        %v657 = vunpack.c.l.b16 %v419
        %v658 = vunpack.c.l.b16 %v420
        %v659 = vunpack.c.l.b16 %v421
        %v660 = vunpack.c.l.b16 %v422
        %v661 = vunpack.c.l.b16 %v423
        %v662 = vunpack.c.l.b16 %v424
        %v663 = vunpack.c.l.b16 %v425
        %v664 = vunpack.c.l.b16 %v426
        %v665 = vunpack.c.l.b16 %v427
        %v666 = vunpack.c.l.b16 %v428
        %v667 = vunpack.c.l.b16 %v429
        %v668 = vunpack.c.l.b16 %v430
        %v669 = vunpack.c.l.b16 %v431
        %v670 = vunpack.c.l.b16 %v432
        %v671 = vunpack.c.l.b16 %v433
        %v672 = vunpack.c.l.b16 %v434
        %v673 = vunpack.c.l.b16 %v435
        %v674 = vunpack.c.l.b16 %v436
        %v675 = vunpack.c.l.b16 %v437
        %v676 = vunpack.c.l.b16 %v438
        %v677 = vunpack.c.l.b16 %v439
        %v678 = vunpack.c.l.b16 %v440
        %v679 = vunpack.c.l.b16 %v441
        %v680 = vunpack.c.l.b16 %v442
        %v681 = vunpack.c.l.b16 %v443
        %v682 = vunpack.c.l.b16 %v444
        %v683 = vunpack.c.l.b16 %v445
        %v684 = vunpack.c.l.b16 %v446
        %v685 = vunpack.c.l.b16 %v447
        %v686 = vunpack.c.l.b16 %v448
        %v687 = vunpack.c.l.b16 %v449
        %v688 = vunpack.c.l.b16 %v450
        %v689 = vpack.c.b16 %v592, %v591
        %v690 = vpack.c.b16 %v594, %v593
        %v691 = vpack.c.b16 %v596, %v595
        %v692 = vpack.c.b16 %v598, %v597
        %v693 = vpack.c.b16 %v600, %v599
        %v694 = vpack.c.b16 %v602, %v601
        %v695 = vpack.c.b16 %v604, %v603
        %v696 = vpack.c.b16 %v606, %v605
        %v697 = vpack.c.b16 %v608, %v607
        %v698 = vpack.c.b16 %v610, %v609
        %v699 = vpack.c.b16 %v612, %v611
        %v700 = vpack.c.b16 %v614, %v613
        %v701 = vpack.c.b16 %v616, %v615
        %v702 = vpack.c.b16 %v618, %v617
        %v703 = vpack.c.b16 %v620, %v619
        %v704 = vpack.c.b16 %v622, %v621
        %v705 = vpack.c.b16 %v624, %v623
        %v706 = vpack.c.b16 %v626, %v625
        %v707 = vpack.c.b16 %v628, %v627
        %v708 = vpack.c.b16 %v630, %v629
        %v709 = vpack.c.b16 %v632, %v631
        %v710 = vpack.c.b16 %v634, %v633
        %v711 = vpack.c.b16 %v636, %v635
        %v712 = vpack.c.b16 %v638, %v637
        %v713 = vpack.c.b16 %v640, %v639
        %v714 = vpack.c.b16 %v642, %v641
        %v715 = vpack.c.b16 %v644, %v643
        %v716 = vpack.c.b16 %v646, %v645
        %v717 = vpack.c.b16 %v648, %v647
        %v718 = vpack.c.b16 %v650, %v649
        %v719 = vpack.c.b16 %v652, %v651
        %v720 = vpack.c.b16 %v654, %v653
        %v721 = vpack.c.b16 %v656, %v655
        %v722 = vpack.c.b16 %v658, %v657
        %v723 = vpack.c.b16 %v660, %v659
        %v724 = vpack.c.b16 %v662, %v661
        %v725 = vpack.c.b16 %v664, %v663
        %v726 = vpack.c.b16 %v666, %v665
        %v727 = vpack.c.b16 %v668, %v667
        %v728 = vpack.c.b16 %v670, %v669
        %v729 = vpack.c.b16 %v672, %v671
        %v730 = vpack.c.b16 %v674, %v673
        %v731 = vpack.c.b16 %v676, %v675
        %v732 = vpack.c.b16 %v678, %v677
        %v733 = vpack.c.b16 %v680, %v679
        %v734 = vpack.c.b16 %v682, %v681
        %v735 = vpack.c.b16 %v684, %v683
        %v736 = vpack.c.b16 %v686, %v685
        %v737 = vpack.c.b16 %v688, %v687
        %vm787 = vcmask 130048
        %v789 = vsel %vm787, %v486, 0
        %791 = vmatprep.subr.bf16.mxu0 0
        %792 = vmatpush1.bf16.msra.mxu0 %v696
        %793 = vmatprep.subr.bf16.mxu0 0
        %794 = vmatpush1.bf16.msra.mxu0 %v695
        %795 = vmatprep.subr.bf16.mxu0 0
        %796 = vmatpush1.bf16.msra.mxu0 %v694
        %797 = vmatprep.subr.bf16.mxu0 0
        %798 = vmatpush1.bf16.msra.mxu0 %v693
        %799 = vmatprep.subr.bf16.mxu0 0
        %800 = vmatpush1.bf16.msra.mxu0 %v692
        %801 = vmatprep.subr.bf16.mxu0 0
        %802 = vmatpush1.bf16.msra.mxu0 %v691
        %803 = vmatprep.subr.bf16.mxu0 0
        %804 = vmatpush1.bf16.msra.mxu0 %v690
        %805 = vmatprep.subr.bf16.mxu0 0
        %806 = vmatpush1.bf16.msra.mxu0 %v689
        %807 = vmatprep.subr.bf16.mxu0 0
        %808 = vmatpush2.bf16.msra.mxu0 %v704
        %809 = vmatprep.subr.bf16.mxu0 0
        %810 = vmatpush2.bf16.msra.mxu0 %v703
        %811 = vmatprep.subr.bf16.mxu0 0
        %812 = vmatpush2.bf16.msra.mxu0 %v702
        %813 = vmatprep.subr.bf16.mxu0 0
        %814 = vmatpush2.bf16.msra.mxu0 %v701
        %815 = vmatprep.subr.bf16.mxu0 0
        %816 = vmatpush2.bf16.msra.mxu0 %v700
        %817 = vmatprep.subr.bf16.mxu0 0
        %818 = vmatpush2.bf16.msra.mxu0 %v699
        %819 = vmatprep.subr.bf16.mxu0 0
        %820 = vmatpush2.bf16.msra.mxu0 %v698
        %821 = vmatprep.subr.bf16.mxu0 0
        %822 = vmatpush2.bf16.msra.mxu0 %v697
        %823 = vmatprep.mubr.bf16.mxu0 %v481
        %824 = vmatmul.mubr.bf16.gmra.mxu0 %v480
        %v825 = vpop.f32.mrf.mxu0
        %v826 = vadd.f32 %v456, %v825
        %v827 = vpop.f32.mrf.mxu0
        %v828 = vpop.f32.mrf.mxu0
        %v829 = vadd.f32 %v456, %v828
        %v830 = vpop.f32.mrf.mxu0
        %831 = vdwg.mxu0
        %832 = vmatprep.subr.bf16.mxu0 0
        %833 = vmatpush1.bf16.msra.mxu0 %v712
        %834 = vmatprep.subr.bf16.mxu0 0
        %835 = vmatpush1.bf16.msra.mxu0 %v711
        %836 = vmatprep.subr.bf16.mxu0 0
        %837 = vmatpush1.bf16.msra.mxu0 %v710
        %838 = vmatprep.subr.bf16.mxu0 0
        %839 = vmatpush1.bf16.msra.mxu0 %v709
        %840 = vmatprep.subr.bf16.mxu0 0
        %841 = vmatpush1.bf16.msra.mxu0 %v708
        %842 = vmatprep.subr.bf16.mxu0 0
        %843 = vmatpush1.bf16.msra.mxu0 %v707
        %844 = vmatprep.subr.bf16.mxu0 0
        %845 = vmatpush1.bf16.msra.mxu0 %v706
        %846 = vmatprep.subr.bf16.mxu0 0
        %847 = vmatpush1.bf16.msra.mxu0 %v705
        %848 = vmatprep.subr.bf16.mxu0 0
        %849 = vmatpush2.bf16.msra.mxu0 %v720
        %850 = vmatprep.subr.bf16.mxu0 0
        %851 = vmatpush2.bf16.msra.mxu0 %v719
        %852 = vmatprep.subr.bf16.mxu0 0
        %853 = vmatpush2.bf16.msra.mxu0 %v718
        %854 = vmatprep.subr.bf16.mxu0 0
        %855 = vmatpush2.bf16.msra.mxu0 %v717
        %856 = vmatprep.subr.bf16.mxu0 0
        %857 = vmatpush2.bf16.msra.mxu0 %v716
        %858 = vmatprep.subr.bf16.mxu0 0
        %859 = vmatpush2.bf16.msra.mxu0 %v715
        %860 = vmatprep.subr.bf16.mxu0 0
        %861 = vmatpush2.bf16.msra.mxu0 %v714
        %862 = vmatprep.subr.bf16.mxu0 0
        %863 = vmatpush2.bf16.msra.mxu0 %v713
        %864 = vmatprep.mubr.bf16.mxu0 %v483
        %865 = vmatmul.mubr.bf16.gmra.mxu0 %v482
        %v866 = vpop.f32.mrf.mxu0
        %v867 = vadd.f32 %v826, %v866
        %v868 = vpop.f32.mrf.mxu0
        %v869 = vpop.f32.mrf.mxu0
        %v870 = vadd.f32 %v829, %v869
        %v871 = vpop.f32.mrf.mxu0
        %872 = vdwg.mxu0
        %873 = vmatprep.subr.bf16.mxu0 0
        %874 = vmatpush1.bf16.msra.mxu0 %v728
        %875 = vmatprep.subr.bf16.mxu0 0
        %876 = vmatpush1.bf16.msra.mxu0 %v727
        %877 = vmatprep.subr.bf16.mxu0 0
        %878 = vmatpush1.bf16.msra.mxu0 %v726
        %879 = vmatprep.subr.bf16.mxu0 0
        %880 = vmatpush1.bf16.msra.mxu0 %v725
        %881 = vmatprep.subr.bf16.mxu0 0
        %882 = vmatpush1.bf16.msra.mxu0 %v724
        %883 = vmatprep.subr.bf16.mxu0 0
        %884 = vmatpush1.bf16.msra.mxu0 %v723
        %885 = vmatprep.subr.bf16.mxu0 0
        %886 = vmatpush1.bf16.msra.mxu0 %v722
        %887 = vmatprep.subr.bf16.mxu0 0
        %888 = vmatpush1.bf16.msra.mxu0 %v721
        %889 = vmatprep.subr.bf16.mxu0 0
        %890 = vmatpush2.bf16.msra.mxu0 %v736
        %891 = vmatprep.subr.bf16.mxu0 0
        %892 = vmatpush2.bf16.msra.mxu0 %v735
        %893 = vmatprep.subr.bf16.mxu0 0
        %894 = vmatpush2.bf16.msra.mxu0 %v734
        %895 = vmatprep.subr.bf16.mxu0 0
        %896 = vmatpush2.bf16.msra.mxu0 %v733
        %897 = vmatprep.subr.bf16.mxu0 0
        %898 = vmatpush2.bf16.msra.mxu0 %v732
        %899 = vmatprep.subr.bf16.mxu0 0
        %900 = vmatpush2.bf16.msra.mxu0 %v731
        %901 = vmatprep.subr.bf16.mxu0 0
        %902 = vmatpush2.bf16.msra.mxu0 %v730
        %903 = vmatprep.subr.bf16.mxu0 0
        %904 = vmatpush2.bf16.msra.mxu0 %v729
        %905 = vmatprep.mubr.bf16.mxu0 %v485
        %906 = vmatmul.mubr.bf16.gmra.mxu0 %v484
        %v907 = vpop.f32.mrf.mxu0
        %v908 = vadd.f32 %v867, %v907
        %v909 = vpop.f32.mrf.mxu0
        %v910 = vpop.f32.mrf.mxu0
        %v911 = vadd.f32 %v870, %v910
        %v912 = vpop.f32.mrf.mxu0
        %913 = vdwg.mxu0
        %914 = vmatprep.subr.bf16.mxu0 0
        %915 = vmatpush1.bf16.msra.mxu0 0
        %916 = vmatprep.subr.bf16.mxu0 0
        %917 = vmatpush1.bf16.msra.mxu0 0
        %918 = vmatprep.subr.bf16.mxu0 0
        %919 = vmatpush1.bf16.msra.mxu0 0
        %920 = vmatprep.subr.bf16.mxu0 0
        %921 = vmatpush1.bf16.msra.mxu0 0
        %922 = vmatprep.subr.bf16.mxu0 0
        %923 = vmatpush1.bf16.msra.mxu0 0
        %924 = vmatprep.subr.bf16.mxu0 0
        %925 = vmatpush1.bf16.msra.mxu0 0
        %926 = vmatprep.subr.bf16.mxu0 0
        %927 = vmatpush1.bf16.msra.mxu0 0
        %928 = vmatprep.subr.bf16.mxu0 0
        %929 = vmatpush1.bf16.msra.mxu0 %v737
        %930 = vmatprep.subr.bf16.mxu0 0
        %931 = vmatpush2.bf16.msra.mxu0 0
        %932 = vmatprep.subr.bf16.mxu0 0
        %933 = vmatpush2.bf16.msra.mxu0 0
        %934 = vmatprep.subr.bf16.mxu0 0
        %935 = vmatpush2.bf16.msra.mxu0 0
        %936 = vmatprep.subr.bf16.mxu0 0
        %937 = vmatpush2.bf16.msra.mxu0 0
        %938 = vmatprep.subr.bf16.mxu0 0
        %939 = vmatpush2.bf16.msra.mxu0 0
        %940 = vmatprep.subr.bf16.mxu0 0
        %941 = vmatpush2.bf16.msra.mxu0 0
        %942 = vmatprep.subr.bf16.mxu0 0
        %943 = vmatpush2.bf16.msra.mxu0 0
        %944 = vmatprep.subr.bf16.mxu0 0
        %945 = vmatpush2.bf16.msra.mxu0 0
        %946 = vmatprep.mubr.bf16.mxu0 0
        %947 = vmatmul.mubr.bf16.gmra.mxu0 %v789
        %v948 = vpop.f32.mrf.mxu0
        %v949 = vadd.f32 %v908, %v948
        %v950 = vpop.f32.mrf.mxu0
        %v951 = vpop.f32.mrf.mxu0
        %v952 = vadd.f32 %v911, %v951
        %v953 = vpop.f32.mrf.mxu0
        %954 = vdwg.mxu0
        %v955 = vmax.f32 %v949, 0.0
        %v956 = vmax.f32 %v952, 0.0
        %v957 = vpack.c.bf16 %v956, %v955
        %v958 = vld [vmem:[#allocation7] sm:$0xf]
        %v959 = vld [vmem:[#allocation7 + $0x4] sm:$0xf]
        %v960 = vld [vmem:[#allocation7 + $0x8] sm:$0xf]
        %v961 = vld [vmem:[#allocation7 + $0xc] sm:$0xf]
        %v962 = vld [vmem:[#allocation7 + $0x10] sm:$0xf]
        %v963 = vld [vmem:[#allocation7 + $0x14] sm:$0xf]
        %v964 = vld [vmem:[#allocation7 + $0x18] sm:$0xf]
        %v965 = vld [vmem:[#allocation7 + $0x1c] sm:$0xf]
        %v966 = vld [vmem:[#allocation7 + $0x20] sm:$0xf]
        %v967 = vld [vmem:[#allocation7 + $0x24] sm:$0xf]
        %v968 = vld [vmem:[#allocation7 + $0x28] sm:$0xf]
        %v969 = vld [vmem:[#allocation7 + $0x2c] sm:$0xf]
        %v970 = vld [vmem:[#allocation7 + $0x30] sm:$0xf]
        %v971 = vld [vmem:[#allocation7 + $0x34] sm:$0xf]
        %v972 = vld [vmem:[#allocation7 + $0x38] sm:$0xf]
        %v973 = vld [vmem:[#allocation7 + $0x3c] sm:$0xf]
        %v974 = vld [vmem:[%s4] sm:$0x1]
        %v976 = vlaneseq
        %v977 = vshrl.u32 %v976, 7
        %v978 = vsub.s32 0, %v977
        %v979 = vrot.slane %v974, %v978
        %v997 = vunpack.c.l.b16 %v958
        %v998 = vunpack.c.l.b16 %v959
        %v999 = vunpack.c.l.b16 %v960
        %v1000 = vunpack.c.l.b16 %v961
        %v1001 = vunpack.c.l.b16 %v962
        %v1002 = vunpack.c.l.b16 %v963
        %v1003 = vunpack.c.l.b16 %v964
        %v1004 = vunpack.c.l.b16 %v965
        %v1005 = vunpack.c.l.b16 %v966
        %v1006 = vunpack.c.l.b16 %v967
        %v1007 = vunpack.c.l.b16 %v968
        %v1008 = vunpack.c.l.b16 %v969
        %v1009 = vunpack.c.l.b16 %v970
        %v1010 = vunpack.c.l.b16 %v971
        %v1011 = vunpack.c.l.b16 %v972
        %v1012 = vunpack.c.l.b16 %v973
        %v1013 = vpack.c.b16 %v998, %v997
        %v1014 = vpack.c.b16 %v1000, %v999
        %v1015 = vpack.c.b16 %v1002, %v1001
        %v1016 = vpack.c.b16 %v1004, %v1003
        %v1017 = vpack.c.b16 %v1006, %v1005
        %v1018 = vpack.c.b16 %v1008, %v1007
        %v1019 = vpack.c.b16 %v1010, %v1009
        %v1020 = vpack.c.b16 %v1012, %v1011
        %1029 = vmatprep.subr.bf16.mxu0 0
        %1030 = vmatpush1.bf16.msra.mxu0 %v1020
        %1031 = vmatprep.subr.bf16.mxu0 0
        %1032 = vmatpush1.bf16.msra.mxu0 %v1019
        %1033 = vmatprep.subr.bf16.mxu0 0
        %1034 = vmatpush1.bf16.msra.mxu0 %v1018
        %1035 = vmatprep.subr.bf16.mxu0 0
        %1036 = vmatpush1.bf16.msra.mxu0 %v1017
        %1037 = vmatprep.subr.bf16.mxu0 0
        %1038 = vmatpush1.bf16.msra.mxu0 %v1016
        %1039 = vmatprep.subr.bf16.mxu0 0
        %1040 = vmatpush1.bf16.msra.mxu0 %v1015
        %1041 = vmatprep.subr.bf16.mxu0 0
        %1042 = vmatpush1.bf16.msra.mxu0 %v1014
        %1043 = vmatprep.subr.bf16.mxu0 0
        %1044 = vmatpush1.bf16.msra.mxu0 %v1013
        %1045 = vmatprep.subr.bf16.mxu0 0
        %1046 = vmatpush2.bf16.msra.mxu0 0
        %1047 = vmatprep.subr.bf16.mxu0 0
        %1048 = vmatpush2.bf16.msra.mxu0 0
        %1049 = vmatprep.subr.bf16.mxu0 0
        %1050 = vmatpush2.bf16.msra.mxu0 0
        %1051 = vmatprep.subr.bf16.mxu0 0
        %1052 = vmatpush2.bf16.msra.mxu0 0
        %1053 = vmatprep.subr.bf16.mxu0 0
        %1054 = vmatpush2.bf16.msra.mxu0 0
        %1055 = vmatprep.subr.bf16.mxu0 0
        %1056 = vmatpush2.bf16.msra.mxu0 0
        %1057 = vmatprep.subr.bf16.mxu0 0
        %1058 = vmatpush2.bf16.msra.mxu0 0
        %1059 = vmatprep.subr.bf16.mxu0 0
        %1060 = vmatpush2.bf16.msra.mxu0 0
        %1061 = vmatprep.mubr.bf16.mxu0 0
        %1062 = vmatmul.mubr.bf16.gmra.mxu0 %v957
        %v1063 = vpop.f32.mrf.mxu0
        %v1064 = vadd.f32 %v979, %v1063
        %v1065 = vpop.f32.mrf.mxu0
        %v1066 = vpop.f32.mrf.mxu0
        %v1067 = vadd.f32 %v979, %v1066
        %v1068 = vpop.f32.mrf.mxu0
        %1069 = vdwg.mxu0
        %v1070 = vmax.f32 %v1064, 0.0
        %v1071 = vmax.f32 %v1067, 0.0
        %v1072 = vpack.c.bf16 %v1071, %v1070
        %v1073 = vld [vmem:[#allocation8] sm:$0xf]
        %v1074 = vld [vmem:[#allocation8 + $0x4] sm:$0xf]
        %v1075 = vld [vmem:[#allocation8 + $0x8] sm:$0xf]
        %v1076 = vld [vmem:[#allocation8 + $0xc] sm:$0xf]
        %v1077 = vld [vmem:[#allocation8 + $0x10] sm:$0xf]
        %v1078 = vld [vmem:[#allocation8 + $0x14] sm:$0xf]
        %v1079 = vld [vmem:[#allocation8 + $0x18] sm:$0xf]
        %v1080 = vld [vmem:[#allocation8 + $0x1c] sm:$0xf]
        %v1081 = vld [vmem:[#allocation8 + $0x20] sm:$0xf]
        %v1082 = vld [vmem:[#allocation8 + $0x24] sm:$0xf]
        %v1083 = vld [vmem:[#allocation8 + $0x28] sm:$0xf]
        %v1084 = vld [vmem:[#allocation8 + $0x2c] sm:$0xf]
        %v1085 = vld [vmem:[#allocation8 + $0x30] sm:$0xf]
        %v1086 = vld [vmem:[#allocation8 + $0x34] sm:$0xf]
        %v1087 = vld [vmem:[#allocation8 + $0x38] sm:$0xf]
        %v1088 = vld [vmem:[#allocation8 + $0x3c] sm:$0xf]
        %v1089 = vld [vmem:[%s6] sm:$0x1]
        %v1091 = vlaneseq
        %v1092 = vshrl.u32 %v1091, 7
        %v1093 = vsub.s32 0, %v1092
        %v1094 = vrot.slane %v1089, %v1093
        %v1112 = vunpack.c.l.b16 %v1073
        %v1113 = vunpack.c.l.b16 %v1074
        %v1114 = vunpack.c.l.b16 %v1075
        %v1115 = vunpack.c.l.b16 %v1076
        %v1116 = vunpack.c.l.b16 %v1077
        %v1117 = vunpack.c.l.b16 %v1078
        %v1118 = vunpack.c.l.b16 %v1079
        %v1119 = vunpack.c.l.b16 %v1080
        %v1120 = vunpack.c.l.b16 %v1081
        %v1121 = vunpack.c.l.b16 %v1082
        %v1122 = vunpack.c.l.b16 %v1083
        %v1123 = vunpack.c.l.b16 %v1084
        %v1124 = vunpack.c.l.b16 %v1085
        %v1125 = vunpack.c.l.b16 %v1086
        %v1126 = vunpack.c.l.b16 %v1087
        %v1127 = vunpack.c.l.b16 %v1088
        %v1128 = vpack.c.b16 %v1113, %v1112
        %v1129 = vpack.c.b16 %v1115, %v1114
        %v1130 = vpack.c.b16 %v1117, %v1116
        %v1131 = vpack.c.b16 %v1119, %v1118
        %v1132 = vpack.c.b16 %v1121, %v1120
        %v1133 = vpack.c.b16 %v1123, %v1122
        %v1134 = vpack.c.b16 %v1125, %v1124
        %v1135 = vpack.c.b16 %v1127, %v1126
        %1144 = vmatprep.subr.bf16.mxu0 0
        %1145 = vmatpush1.bf16.msra.mxu0 %v1135
        %1146 = vmatprep.subr.bf16.mxu0 0
        %1147 = vmatpush1.bf16.msra.mxu0 %v1134
        %1148 = vmatprep.subr.bf16.mxu0 0
        %1149 = vmatpush1.bf16.msra.mxu0 %v1133
        %1150 = vmatprep.subr.bf16.mxu0 0
        %1151 = vmatpush1.bf16.msra.mxu0 %v1132
        %1152 = vmatprep.subr.bf16.mxu0 0
        %1153 = vmatpush1.bf16.msra.mxu0 %v1131
        %1154 = vmatprep.subr.bf16.mxu0 0
        %1155 = vmatpush1.bf16.msra.mxu0 %v1130
        %1156 = vmatprep.subr.bf16.mxu0 0
        %1157 = vmatpush1.bf16.msra.mxu0 %v1129
        %1158 = vmatprep.subr.bf16.mxu0 0
        %1159 = vmatpush1.bf16.msra.mxu0 %v1128
        %1160 = vmatprep.subr.bf16.mxu0 0
        %1161 = vmatpush2.bf16.msra.mxu0 0
        %1162 = vmatprep.subr.bf16.mxu0 0
        %1163 = vmatpush2.bf16.msra.mxu0 0
        %1164 = vmatprep.subr.bf16.mxu0 0
        %1165 = vmatpush2.bf16.msra.mxu0 0
        %1166 = vmatprep.subr.bf16.mxu0 0
        %1167 = vmatpush2.bf16.msra.mxu0 0
        %1168 = vmatprep.subr.bf16.mxu0 0
        %1169 = vmatpush2.bf16.msra.mxu0 0
        %1170 = vmatprep.subr.bf16.mxu0 0
        %1171 = vmatpush2.bf16.msra.mxu0 0
        %1172 = vmatprep.subr.bf16.mxu0 0
        %1173 = vmatpush2.bf16.msra.mxu0 0
        %1174 = vmatprep.subr.bf16.mxu0 0
        %1175 = vmatpush2.bf16.msra.mxu0 0
        %1176 = vmatprep.mubr.bf16.mxu0 0
        %1177 = vmatmul.mubr.bf16.gmra.mxu0 %v1072
        %v1178 = vpop.f32.mrf.mxu0
        %v1179 = vadd.f32 %v1094, %v1178
        %v1180 = vpop.f32.mrf.mxu0
        %v1181 = vpop.f32.mrf.mxu0
        %v1182 = vadd.f32 %v1094, %v1181
        %v1183 = vpop.f32.mrf.mxu0
        %1184 = vdwg.mxu0
        %v1185 = vlaneseq
        %v1186 = vand.u32 %v1185, 127
        %vm1187 = vcmp.lt.s32.totalorder %v1186, 10
        %v1188 = vsel %vm1187, %v1179, -1e+30
        %v1189 = vsel %vm1187, %v1182, -1e+30
        %1190 = vmax.xlane.f32.xlu0 %v1188
        %v1191 = vpop.xlane.xlu0 %1190
        %1192 = vmax.xlane.f32.xlu0 %v1189
        %v1193 = vpop.xlane.xlu0 %1192
        %v1194 = vsub.f32 %v1188, %v1191
        %v1195 = vsub.f32 %v1189, %v1193
        %v1196 = vmul.f32 %v1194, 1.442695
        %v1197 = vpow.pop %v1196
        %v1198 = vmul.f32 %v1195, 1.442695
        %v1199 = vpow.pop %v1198
        %1200 = vadd.xlane.f32.xlu0 %v1197
        %v1201 = vpop.xlane.xlu0 %1200
        %1202 = vadd.xlane.f32.xlu0 %v1199
        %v1203 = vpop.xlane.xlu0 %1202
        %v1204 = vrcp.pop %v1201
        %v1205 = vmul.f32 %v1197, %v1204
        %v1206 = vrcp.pop %v1203
        %v1207 = vmul.f32 %v1199, %v1206
        %v1208 = vpack.c.bf16 %v1207, %v1205
        %v1210 = vunpack.c.l.b16 %v1208
        %v1211 = vunpack.c.h.b16 %v1208
        %v1212 = vpack.c.b16 %v1210, %v1210
        %v1213 = vpack.c.b16 %v1211, %v1211
        %1216 = vst [vmem:[%s341] sm:$0xf] %v1212
        %1217 = vst [vmem:[%s341 + $0x4] sm:$0xf] %v1213
        %s1218 = sand.u32 %s186, 1
        %s1219 = scalar_lea.sflag [#allocation4], %s1218
        %s1220 = sand.u32 %s186, 1
        %s1221 = smul.addr %s1220, 8
        %s1222 = scalar_lea.vmem [#allocation10], %s1221
        // Predicated region
        $region65: #{tpu_custom_call.1} parent=47 // pred_check
          %p1223 = pneg %p196
        $region66: #{tpu_custom_call.1} parent=47 // pred_check_branch
          %1225 = sbr.rel (%p1223) target = $region68
        $region67: #{tpu_custom_call.1} parent=47 // pred_region
          %s1226 = smul.u32 2, %s26
          %s1228 = ssub.s32 128, 128
          %1229 = vsyncadd %s1219, %s1228
          %s1230 = smul.addr %s1226, 64
          %s1231 = scalar_lea.hbm %s7, %s1230
          %s1232 = sshll.u32 %s1222, 4
          %s1233 = int_to_ptr.vmem [resolvable:$true] %s1232
          %1238 = dma.vmem_to_hbm [thread:$0]  %s1233, 128, %s1231, %s1219, 64, 64, 4
        $region68: #{tpu_custom_call.1} parent=47 // pred_fallthru
          _
      $region48: #{tpu_custom_call.1} parent=5 // pred_fallthru
        _
      %p1239 = scmp.le.s32.totalorder 2, %s21
      // Predicated region
      $region69: #{tpu_custom_call.1} parent=5 // pred_check
        %p1240 = pneg %p1239
      $region70: #{tpu_custom_call.1} parent=5 // pred_check_branch
        %1242 = sbr.rel (%p1240) target = $region72
      $region71: #{tpu_custom_call.1} parent=5 // pred_region
        %s1243 = ssub.s32 %s21, 2
        // Predicated region
        $region73: #{tpu_custom_call.1} parent=71 // pred_check
          %p1244 = pneg %p202
        $region74: #{tpu_custom_call.1} parent=71 // pred_check_branch
          %1246 = sbr.rel (%p1244) target = $region76
        $region75: #{tpu_custom_call.1} parent=71 // pred_region
          %s1247 = sand.u32 %s187, 1
          %s1248 = scalar_lea.sflag [#allocation4], %s1247
          %s1249 = sand.u32 %s187, 1
          %s1250 = smul.addr %s1249, 8
          %s1251 = scalar_lea.vmem [#allocation10], %s1250
          %1252 = dma.done %s1248, 128
        $region76: #{tpu_custom_call.1} parent=71 // pred_fallthru
          _
      $region72: #{tpu_custom_call.1} parent=5 // pred_fallthru
        _
    $region6: #{tpu_custom_call.1} parent=1 // loop_footer
      %s25 = sadd.s32 1, %s21
    $region7: #{tpu_custom_call.1} parent=1 // loop_footer_branch
      %20 = sbr.rel target = $region3
    $region8: #{tpu_custom_call.1} parent=1 // loop_exit
      _
    %1253 = vsyncpa [#allocation3], 1
    %s1254 = scalar_lea.sflag [#allocation3], 1
    %1255 = vsyncpa %s1254, 1
    %1256 = vsyncpa [#allocation6], 1
    %1257 = vsyncpa [#allocation9], 1
    %1258 = vsyncpa [#allocation4], 1
    %s1259 = scalar_lea.sflag [#allocation4], 1
    %1260 = vsyncpa %s1259, 1

</llo_original>
